<compile_context>
chip_gen: v6e
topology: v6e:2x2x1
jax: 0.10.0
libtpu: 0.0.40
codegen_flags: <defaults>
</compile_context>

<pallas_src>
import functools

import jax
import jax.numpy as jnp
from jax.experimental import pallas as pl
from jax.experimental.pallas import tpu as pltpu


def _round_up(v, m):
    return (v + m - 1) // m * m


def _vmem_limit_bytes():
    cap = 64 << 20
    try:
        cap = int(pltpu.get_tpu_info().vmem_capacity_bytes)
    except Exception:
        pass
    return int(min(64 << 20, (cap * 9) // 10))


def _supports_bf16_eup():
    # bf16 elementwise/exp datapath exists on v6e/v7x; v5e (and older) would
    # emulate it, so keep f32 there.
    try:
        kind = jax.devices()[0].device_kind.lower()
    except Exception:
        return False
    return ("v6" in kind) or ("v7" in kind)


def _auto_tile_rows(n, xp_cols, heads):
    """Pick a dst-row tile that keeps the working set inside VMEM."""
    budget = _vmem_limit_bytes() * 6 // 10
    resident = n * xp_cols * 2 + heads * n * 4           # xp (bf16) + a_srcT (f32)
    chosen = None
    for tq in (512, 256, 128, 64, 32, 16, 8):
        if n % tq:
            continue
        if chosen is None:
            chosen = tq                                   # smallest divider fallback
        per_tile = tq * n * (2 * 2 + 4 * 4)               # bias double-buffer + f32 temps
        if resident + per_tile <= budget:
            return tq
    return chosen if chosen is not None else n


# ----------------------------- kernels ---------------------------------------
def _gat_project_kernel(h_ref, w_ref, colpat_ref, xp_ref, sc_ref, *,
                        xp_cols, sc_cols):
    """One combined MXU matmul: projected features + folded attention scores.

    h_ref     : (TR, F_in)      f32   node features (row tile)
    w_ref     : (F_in, Pcols)   bf16  [W_allheads(packed Cpad) | W@a_src | W@a_dst | 0pad]
    colpat_ref: (1, xp_cols)    f32   1.0 at each head's denominator column
    xp_ref    : (TR, xp_cols)   bf16  per-head [W_h x | 1 | 0] blocks (MXU-ready)
    sc_ref    : (TR, 2H)        f32   [src scores | dst scores]
    """
    proj = jnp.dot(h_ref[...].astype(jnp.bfloat16), w_ref[...],
                   preferred_element_type=jnp.float32)
    xp_ref[...] = (proj[:, :xp_cols] + colpat_ref[...]).astype(jnp.bfloat16)
    sc_ref[...] = proj[:, xp_cols:xp_cols + sc_cols]


def _gat_attention_kernel(bias_ref, xp_ref, a_dst_ref, a_srcT_ref, b_ref, *rest,
                          heads, c, c_pad, last, use_bf16_exp):
    """Dst-row-tiled GAT attention (+ fused Linear/log_softmax on last layer).

    bias_ref  : (TQ, N)        bf16  additive adjacency mask (0 / -1e30), adj[dst, src]
    xp_ref    : (N, H*Cpad)    bf16  projected sources, per-head [xp_h | 1 | 0]
    a_dst_ref : (TQ, H)        f32   dst attention scores for this tile
    a_srcT_ref: (H, N)         f32   src attention scores, heads on sublanes (lane-dense)
    b_ref     : (1, H*C)       f32   GATConv bias (applied post-aggregation)
    rest (last=False): out_ref (TQ, H*C) f32, acc scratch (TQ, H*C) f32
    rest (last=True) : lin_w (H*C, 128) bf16, lin_b (1, 128) f32,
                       out_ref (TQ, 128) f32, acc scratch (TQ, H*C) f32
    """
    if last:
        lw_ref, lb_ref, out_ref, acc_ref = rest
    else:
        out_ref, acc_ref = rest

    bias = bias_ref[...].astype(jnp.float32)     # single cast, hoisted out of head loop
    a_dst = a_dst_ref[...]
    a_srcT = a_srcT_ref[...]
    xp = xp_ref[...]                             # already bf16

    for hh in range(heads):                      # static unroll over heads
        # logits[i, j] = leaky_relu(a_dst[i] + a_src[j], 0.2) + mask_bias[i, j]
        logits = a_dst[:, hh:hh + 1] + a_srcT[hh:hh + 1, :]
        logits = jnp.where(logits > 0, logits, 0.2 * logits) + bias
        m = jnp.max(logits, axis=-1, keepdims=True)
        z = logits - m
        if use_bf16_exp:
            p = jnp.exp(z.astype(jnp.bfloat16))          # bf16 EUP (v6e/v7x)
        else:
            p = jnp.exp(z).astype(jnp.bfloat16)          # f32 EUP (v5e)
        # PV matmul with the softmax denominator folded into the extra column.
        pv = jnp.dot(p, xp[:, hh * c_pad:(hh + 1) * c_pad],
                     preferred_element_type=jnp.float32)  # (TQ, Cpad)
        denom = pv[:, c:c + 1]                            # = row-sum of p
        acc_ref[:, hh * c:(hh + 1) * c] = pv[:, :c] / denom   # exact normalization

    h_t = acc_ref[...] + b_ref[...]
    # ELU; the dead exp branch may overflow to +inf but is selected away.
    h_t = jnp.where(h_t > 0, h_t, jnp.exp(h_t) - 1.0)
    # TODO(synk): F.dropout treated as inference-mode identity (no RNG).

    if not last:
        out_ref[...] = h_t
    else:
        logit = jnp.dot(h_t.astype(jnp.bfloat16), lw_ref[...],
                        preferred_element_type=jnp.float32) + lb_ref[...]
        mm = jnp.max(logit, axis=-1, keepdims=True)
        zz = logit - mm
        out_ref[...] = zz - jnp.log(jnp.sum(jnp.exp(zz), axis=-1, keepdims=True))


# ----------------------------- wrapper ----------------------------------------
def _repack_layer(layer, c_pad):
    """Combined weight slab + denominator column pattern + bias for one layer."""
    w = layer["w"]                          # (H, F_in, C)
    a_src = layer["a_src"][:, 0, :]         # (H, C)
    a_dst = layer["a_dst"][:, 0, :]         # (H, C)
    heads, f_in, c = w.shape
    xp_cols = heads * c_pad
    # per-head projection columns, zero-padded to Cpad per head
    wt = jnp.transpose(w, (1, 0, 2))                              # (F_in, H, C)
    w_xp = (jnp.zeros((f_in, heads, c_pad), jnp.float32)
            .at[:, :, :c].set(wt).reshape(f_in, xp_cols))
    # folded attention vectors: src cols then dst cols
    w_att = jnp.concatenate([jnp.einsum("hfc,hc->fh", w, a_src),
                             jnp.einsum("hfc,hc->fh", w, a_dst)], axis=1)
    w_comb = jnp.concatenate([w_xp, w_att], axis=1)               # (F_in, xp_cols+2H)
    pcols = _round_up(w_comb.shape[1], 128)
    w_comb = jnp.pad(w_comb, ((0, 0), (0, pcols - w_comb.shape[1])))
    # ones at each head's appended denominator column
    colpat = (jnp.zeros((1, heads, c_pad), jnp.float32)
              .at[:, :, c].set(1.0).reshape(1, xp_cols))
    b_l = layer["b"].reshape(1, heads * c).astype(jnp.float32)
    return w_comb.astype(jnp.bfloat16), colpat, b_l


def gat_linear_forward(x, adj, params, *, tile_rows=None):
    """x: (N, F_in) f32; adj: (N, N) mask (adj[dst, src], self loops included)."""
    n = x.shape[0]
    convs = params["convs"]
    num_layers = len(convs)
    heads, _, c = convs[0]["w"].shape
    c_pad = _round_up(c + 1, 8)              # per-head block: [xp_h | 1 | 0pad]
    xp_cols = heads * c_pad
    use_bf16_exp = _supports_bf16_eup()

    if tile_rows is None:
        tile_rows = _auto_tile_rows(n, xp_cols, heads)
    assert n % tile_rows == 0, "tile_rows must divide the node count"
    num_tiles = n // tile_rows

    cparams = pltpu.CompilerParams(
        dimension_semantics=("parallel",),
        vmem_limit_bytes=_vmem_limit_bytes())

    # additive adjacency mask, computed ONCE (hoisted out of the head loops)
    bias = jnp.where(adj > 0, 0.0, -1e30).astype(jnp.bfloat16)

    # packed per-layer weights
    packed = [_repack_layer(layer, c_pad) for layer in convs]

    # final Linear padded to lane-dense 128 output columns
    ncls = params["lin_w"].shape[1]
    ncls_pad = _round_up(ncls, 128)
    lin_w_p = jnp.pad(params["lin_w"],
                      ((0, 0), (0, ncls_pad - ncls))).astype(jnp.bfloat16)
    lin_b_p = jnp.pad(params["lin_b"].reshape(1, ncls),
                      ((0, 0), (0, ncls_pad - ncls)),
                      constant_values=-1e30).astype(jnp.float32)

    h = x.astype(jnp.float32)
    for l in range(num_layers):
        w_comb, colpat, b_l = packed[l]
        f_in = w_comb.shape[0]

        # ---- 1) projection: xp (N, H*Cpad) bf16, sc (N, 2H) f32 -------------
        proj_fn = functools.partial(_gat_project_kernel,
                                    xp_cols=xp_cols, sc_cols=2 * heads)
        xp, sc = pl.pallas_call(
            proj_fn,
            grid=(num_tiles,),
            in_specs=[pl.BlockSpec((tile_rows, f_in), lambda i: (i, 0)),
                      pl.BlockSpec(w_comb.shape, lambda i: (0, 0)),
                      pl.BlockSpec(colpat.shape, lambda i: (0, 0))],
            out_specs=[pl.BlockSpec((tile_rows, xp_cols), lambda i: (i, 0)),
                       pl.BlockSpec((tile_rows, 2 * heads), lambda i: (i, 0))],
            out_shape=(jax.ShapeDtypeStruct((n, xp_cols), jnp.bfloat16),
                       jax.ShapeDtypeStruct((n, 2 * heads), jnp.float32)),
            compiler_params=cparams,
        )(h, w_comb, colpat)

        # one tiny transpose per layer -> lane-dense per-head src score rows
        a_srcT = sc[:, :heads].T              # (H, N)
        a_dst = sc[:, heads:]                 # (N, H)

        # ---- 2) attention over dst-row tiles (+ fused Linear on last layer) -
        last = (l == num_layers - 1)
        attn_fn = functools.partial(_gat_attention_kernel, heads=heads, c=c,
                                    c_pad=c_pad, last=last,
                                    use_bf16_exp=use_bf16_exp)
        in_specs = [pl.BlockSpec((tile_rows, n), lambda i: (i, 0)),       # bias
                    pl.BlockSpec((n, xp_cols), lambda i: (0, 0)),         # xp
                    pl.BlockSpec((tile_rows, heads), lambda i: (i, 0)),   # a_dst
                    pl.BlockSpec((heads, n), lambda i: (0, 0)),           # a_srcT
                    pl.BlockSpec((1, heads * c), lambda i: (0, 0))]       # GAT bias
        inputs = [bias, xp, a_dst, a_srcT, b_l]
        if last:
            in_specs += [pl.BlockSpec(lin_w_p.shape, lambda i: (0, 0)),
                         pl.BlockSpec(lin_b_p.shape, lambda i: (0, 0))]
            inputs += [lin_w_p, lin_b_p]
            out_cols = ncls_pad
        else:
            out_cols = heads * c

        h = pl.pallas_call(
            attn_fn,
            grid=(num_tiles,),
            in_specs=in_specs,
            out_specs=pl.BlockSpec((tile_rows, out_cols), lambda i: (i, 0)),
            out_shape=jax.ShapeDtypeStruct((n, out_cols), jnp.float32),
            scratch_shapes=[pltpu.VMEM((tile_rows, heads * c), jnp.float32)],
            compiler_params=cparams,
        )(*inputs)

    return h[:, :ncls]


# ----------------------------- example / smoke test ---------------------------
if __name__ == "__main__":
    N, F_IN, HID, HEADS, NCLS, NLAYER, E = 64, 16, 8, 8, 4, 2, 160

    key = jax.random.PRNGKey(0)
    ks = jax.random.split(key, 12)

    # graph data (data.x, data.edge_index, data.edge_attr)
    x = jax.random.normal(ks[0], (N, F_IN), jnp.float32)
    src = jax.random.randint(ks[1], (E,), 0, N)
    dst = jax.random.randint(ks[2], (E,), 0, N)
    edge_attr = jax.random.uniform(ks[3], (E, 1), jnp.float32)  # ignored (edge_dim=None)

    # dense adjacency mask adj[dst, src]; GATConv adds self loops
    adj = jnp.zeros((N, N), jnp.float32).at[dst, src].set(1.0)
    adj = jnp.maximum(adj, jnp.eye(N, dtype=jnp.float32))

    def glorot(k, shape):
        fan = shape[-2] + shape[-1]
        return (jax.random.normal(k, shape, jnp.float32)
                * jnp.sqrt(2.0 / jnp.float32(fan)))

    params = {
        "convs": [
            {   # conv0: F_IN -> HID per head, 8 heads (concat => 8*HID)
                "w": glorot(ks[4], (HEADS, F_IN, HID)),
                "a_src": glorot(ks[5], (HEADS, 1, HID)),
                "a_dst": glorot(ks[6], (HEADS, 1, HID)),
                "b": jnp.zeros((HEADS, 1, HID), jnp.float32),
            },
            {   # conv1: 8*HID -> HID per head, 8 heads
                # TODO(synk): input dim adapted to HEADS*HID (see header note).
                "w": glorot(ks[7], (HEADS, HEADS * HID, HID)),
                "a_src": glorot(ks[8], (HEADS, 1, HID)),
                "a_dst": glorot(ks[9], (HEADS, 1, HID)),
                "b": jnp.zeros((HEADS, 1, HID), jnp.float32),
            },
        ][:NLAYER],
        "lin_w": glorot(ks[10], (HEADS * HID, NCLS)),
        "lin_b": jnp.zeros((1, NCLS), jnp.float32),
    }

    out = gat_linear_forward(x, adj, params, tile_rows=16)   # grid of 4 dst tiles
    jax.block_until_ready(out)
    assert out.shape == (N, NCLS)
    assert bool(jnp.all(jnp.isfinite(out)))
    # log_softmax rows must exponentiate to probability distributions
    assert bool(jnp.allclose(jnp.sum(jnp.exp(out), axis=1), 1.0, atol=1e-3))
    print("KERNEL_OK")
</pallas_src>

<mosaic_0001>
module attributes {stable_mosaic.version = 11 : i64} {
  func.func @_gat_project_kernel(%arg0: i32, %arg1: memref<16x16xf32, #tpu.memory_space<vmem>>, %arg2: memref<16x256xbf16, #tpu.memory_space<vmem>>, %arg3: memref<1x128xf32, #tpu.memory_space<vmem>>, %arg4: memref<16x128xbf16, #tpu.memory_space<vmem>>, %arg5: memref<16x16xf32, #tpu.memory_space<vmem>>) attributes {dimension_semantics = [#tpu.dimension_semantics<parallel>], iteration_bounds = array<i64: 4>, scalar_prefetch = 0 : i64, scratch_operands = 0 : i64, tpu.core_type = #tpu.core_type<tc>, window_params = [{transform_indices = @transform_0, window_bounds = array<i64: 16, 16>}, {pipeline_mode = #tpu.pipeline_mode<synchronous>, transform_indices = @transform_1, window_bounds = array<i64: 16, 256>}, {pipeline_mode = #tpu.pipeline_mode<synchronous>, transform_indices = @transform_2, window_bounds = array<i64: 1, 128>}, {transform_indices = @transform_3, window_bounds = array<i64: 16, 128>}, {transform_indices = @transform_4, window_bounds = array<i64: 16, 16>}]} {
    %c0 = arith.constant 0 : index
    %c0_0 = arith.constant 0 : index
    %0 = vector.load %arg1[%c0, %c0_0] : memref<16x16xf32, #tpu.memory_space<vmem>>, vector<16x16xf32>
    %1 = arith.truncf %0 : vector<16x16xf32> to vector<16x16xbf16>
    %c0_1 = arith.constant 0 : index
    %c0_2 = arith.constant 0 : index
    %2 = vector.load %arg2[%c0_1, %c0_2] : memref<16x256xbf16, #tpu.memory_space<vmem>>, vector<16x256xbf16>
    %cst = arith.constant dense<0.000000e+00> : vector<16x256xf32>
    %3 = tpu.matmul %1, %2, %cst {dimension_numbers = #tpu.dot_dimension_numbers<[1], [0], [0], [1], [0, 0, 1, 1], [], []>} : vector<16x16xbf16>, vector<16x256xbf16>, vector<16x256xf32> -> vector<16x256xf32>
    %4 = vector.extract_strided_slice %3 {offsets = [0, 0], sizes = [16, 128], strides = [1, 1]} : vector<16x256xf32> to vector<16x128xf32>
    %c0_3 = arith.constant 0 : index
    %c0_4 = arith.constant 0 : index
    %5 = vector.load %arg3[%c0_3, %c0_4] : memref<1x128xf32, #tpu.memory_space<vmem>>, vector<1x128xf32>
    %6 = vector.broadcast %5 : vector<1x128xf32> to vector<16x128xf32>
    %7 = arith.addf %4, %6 : vector<16x128xf32>
    %8 = arith.truncf %7 : vector<16x128xf32> to vector<16x128xbf16>
    %c0_5 = arith.constant 0 : index
    %c0_6 = arith.constant 0 : index
    %9 = vector.load %arg4[%c0_5, %c0_6] : memref<16x128xbf16, #tpu.memory_space<vmem>>, vector<16x128xbf16>
    tpu.vector_store %arg4[%c0_5, %c0_6], %8 {strides = array<i32>} : memref<16x128xbf16, #tpu.memory_space<vmem>>, vector<16x128xbf16>,
    %10 = vector.extract_strided_slice %3 {offsets = [0, 128], sizes = [16, 16], strides = [1, 1]} : vector<16x256xf32> to vector<16x16xf32>
    %c0_7 = arith.constant 0 : index
    %c0_8 = arith.constant 0 : index
    %11 = vector.load %arg5[%c0_7, %c0_8] : memref<16x16xf32, #tpu.memory_space<vmem>>, vector<16x16xf32>
    tpu.vector_store %arg5[%c0_7, %c0_8], %10 {strides = array<i32>} : memref<16x16xf32, #tpu.memory_space<vmem>>, vector<16x16xf32>,
    return
  }
  func.func @transform_0(%arg0: i32) -> (i32, i32) {
    %c0_i32 = arith.constant 0 : i32
    %c0_i32_0 = arith.constant 0 : i32
    return %arg0, %c0_i32 : i32, i32
  }
  func.func @transform_1(%arg0: i32) -> (i32, i32) {
    %c0_i32 = arith.constant 0 : i32
    %c0_i32_0 = arith.constant 0 : i32
    %c0_i32_1 = arith.constant 0 : i32
    return %c0_i32, %c0_i32_0 : i32, i32
  }
  func.func @transform_2(%arg0: i32) -> (i32, i32) {
    %c0_i32 = arith.constant 0 : i32
    %c0_i32_0 = arith.constant 0 : i32
    %c0_i32_1 = arith.constant 0 : i32
    return %c0_i32, %c0_i32_0 : i32, i32
  }
  func.func @transform_3(%arg0: i32) -> (i32, i32) {
    %c0_i32 = arith.constant 0 : i32
    %c0_i32_0 = arith.constant 0 : i32
    return %arg0, %c0_i32 : i32, i32
  }
  func.func @transform_4(%arg0: i32) -> (i32, i32) {
    %c0_i32 = arith.constant 0 : i32
    %c0_i32_0 = arith.constant 0 : i32
    return %arg0, %c0_i32 : i32, i32
  }
}

</mosaic_0001>

<llo_original>
// kernel: tpu_custom_call.1
$region0: #{tpu_custom_call.1}
  #allocation0 [shape = 'u32[]', space=smem, size = 0x4, offset = 0x4, fixed_abs, tag = 'smem constant byte address 0x4 - core index']
  #allocation1 [shape = 'u32[144,128]{1,0:T(1,128)}', space=vmem, size = 0x12000, scoped, tag = 'internal scratch']
  %s0 = inlined_call_operand.vmem [shape: f32[64,16], index: 0, kind: input, shape index: {}]
  %s1 = inlined_call_operand.vmem [shape: bf16[16,256], index: 1, kind: input, shape index: {}]
  %s2 = inlined_call_operand.vmem [shape: f32[1,128], index: 2, kind: input, shape index: {}]
  %s3 = inlined_call_operand.hbm [shape: bf16[64,128], index: 3, kind: output, shape index: {0}]
  %s4 = inlined_call_operand.vmem [shape: f32[64,16], index: 4, kind: output, shape index: {1}]
  %5 = xla_tuple %s3, %s4
  %s6 = sld [smem:[#allocation0]]
  $region53: #{tpu_custom_call.1} parent=0
    _
  %s8 = ssub.s32 1, %s6
  %s9 = scalar_select 0, %s8, %s6
  $region1: #{tpu_custom_call.1} parent=0
    #allocation2 [shape = 'u8[8192]{0}', space=vmem, size = 0x2000, scoped, tag = 'output window, operand 0']
    #allocation3 [shape = 's32[2]{0}', space=sflag, size = 0x8, scoped, tag = 'scoped memory for tpu_custom_call.1']
    %10 = vsyncpa [#allocation3], 0
    %s11 = scalar_lea.sflag [#allocation3], 1
    %12 = vsyncpa %s11, 0
    loop: start=0, step=1, limit=6
    $region2: #{tpu_custom_call.1} parent=1 // loop_pre_header
      _
    $region3: #{tpu_custom_call.1} parent=1 // loop_header
      %s14 = sphi 0, %s18
      %p15 = scmp.ge.s32.totalorder %s14, 6
      %s24 = sphi 0, %s26
      %s27 = sphi 0, %s24
      %s28 = sphi 0, %s27
      %s44 = sphi 0, %s28
      %s48 = sphi 0, %s48
      %s50 = sphi 0, %s48
      %s51 = sphi 0, %s50
      %s65 = sphi 0, %s51
      %s69 = sphi 0, %s69
      %s71 = sphi 0, %s69
      %s72 = sphi 0, %s71
      %s86 = sphi 0, %s72
      %s92 = sphi 0, %s94
      %s95 = sphi 0, %s92
      %s96 = sphi 0, %s95
      %s112 = sphi 0, %s96
      %s118 = sphi 0, %s120
      %s121 = sphi 0, %s118
      %s122 = sphi 0, %s121
      %s138 = sphi 0, %s122
    $region4: #{tpu_custom_call.1} parent=1 // loop_header_branch
      %17 = sbr.rel (%p15) target = $region8
    $region5: #{tpu_custom_call.1} parent=1 // loop_body
      %s19 = ssub.s32 %s14, 1
      %s20 = ssub.s32 %s14, 2
      %s21 = sadd.s32 %s14, 1
      %s22 = ssub.s32 %s14, %s21
      %p23 = scmp.eq.s32.totalorder %s22, 0
      %s25 = sadd.s32 %s24, 1
      %s26 = scalar_select %p23, %s24, %s25
      %p29 = pneg %p23
      %p30 = scmp.eq.s32.totalorder %s14, 3
      %p31 = por %p29, %p30
      %p32 = scmp.ne.s32.totalorder %s24, %s27
      %p33 = scmp.eq.s32.totalorder %s14, 0
      %p34 = por %p32, %p33
      %p35 = scmp.ne.s32.totalorder %s24, %s27
      %p36 = scmp.eq.s32.totalorder %s19, 3
      %p37 = por %p35, %p36
      %p38 = scmp.ne.s32.totalorder %s27, %s28
      %p39 = scmp.eq.s32.totalorder %s19, 0
      %p40 = por %p38, %p39
      %p41 = scmp.ne.s32.totalorder %s27, %s28
      %p42 = scmp.eq.s32.totalorder %s20, 3
      %p43 = por %p41, %p42
      %p45 = scmp.ne.s32.totalorder %s28, %s44
      %p46 = scmp.eq.s32.totalorder %s20, 0
      %p47 = por %p45, %p46
      %s49 = sadd.s32 %s48, 1
      %p52 = scmp.eq.s32.totalorder %s14, 3
      %p53 = scmp.ne.s32.totalorder %s48, %s50
      %p54 = scmp.eq.s32.totalorder %s14, 0
      %p55 = por %p53, %p54
      %p56 = scmp.ne.s32.totalorder %s48, %s50
      %p57 = scmp.eq.s32.totalorder %s19, 3
      %p58 = por %p56, %p57
      %p59 = scmp.ne.s32.totalorder %s50, %s51
      %p60 = scmp.eq.s32.totalorder %s19, 0
      %p61 = por %p59, %p60
      %p62 = scmp.ne.s32.totalorder %s50, %s51
      %p63 = scmp.eq.s32.totalorder %s20, 3
      %p64 = por %p62, %p63
      %p66 = scmp.ne.s32.totalorder %s51, %s65
      %p67 = scmp.eq.s32.totalorder %s20, 0
      %p68 = por %p66, %p67
      %s70 = sadd.s32 %s69, 1
      %p73 = scmp.eq.s32.totalorder %s14, 3
      %p74 = scmp.ne.s32.totalorder %s69, %s71
      %p75 = scmp.eq.s32.totalorder %s14, 0
      %p76 = por %p74, %p75
      %p77 = scmp.ne.s32.totalorder %s69, %s71
      %p78 = scmp.eq.s32.totalorder %s19, 3
      %p79 = por %p77, %p78
      %p80 = scmp.ne.s32.totalorder %s71, %s72
      %p81 = scmp.eq.s32.totalorder %s19, 0
      %p82 = por %p80, %p81
      %p83 = scmp.ne.s32.totalorder %s71, %s72
      %p84 = scmp.eq.s32.totalorder %s20, 3
      %p85 = por %p83, %p84
      %p87 = scmp.ne.s32.totalorder %s72, %s86
      %p88 = scmp.eq.s32.totalorder %s20, 0
      %p89 = por %p87, %p88
      %s90 = ssub.s32 %s14, %s21
      %p91 = scmp.eq.s32.totalorder %s90, 0
      %s93 = sadd.s32 %s92, 1
      %s94 = scalar_select %p91, %s92, %s93
      %p97 = pneg %p91
      %p98 = scmp.eq.s32.totalorder %s14, 3
      %p99 = por %p97, %p98
      %p100 = scmp.ne.s32.totalorder %s92, %s95
      %p101 = scmp.eq.s32.totalorder %s14, 0
      %p102 = por %p100, %p101
      %p103 = scmp.ne.s32.totalorder %s92, %s95
      %p104 = scmp.eq.s32.totalorder %s19, 3
      %p105 = por %p103, %p104
      %p106 = scmp.ne.s32.totalorder %s95, %s96
      %p107 = scmp.eq.s32.totalorder %s19, 0
      %p108 = por %p106, %p107
      %p109 = scmp.ne.s32.totalorder %s95, %s96
      %p110 = scmp.eq.s32.totalorder %s20, 3
      %p111 = por %p109, %p110
      %p113 = scmp.ne.s32.totalorder %s96, %s112
      %p114 = scmp.eq.s32.totalorder %s20, 0
      %p115 = por %p113, %p114
      %s116 = ssub.s32 %s14, %s21
      %p117 = scmp.eq.s32.totalorder %s116, 0
      %s119 = sadd.s32 %s118, 1
      %s120 = scalar_select %p117, %s118, %s119
      %p123 = pneg %p117
      %p124 = scmp.eq.s32.totalorder %s14, 3
      %p125 = por %p123, %p124
      %p126 = scmp.ne.s32.totalorder %s118, %s121
      %p127 = scmp.eq.s32.totalorder %s14, 0
      %p128 = por %p126, %p127
      %p129 = scmp.ne.s32.totalorder %s118, %s121
      %p130 = scmp.eq.s32.totalorder %s19, 3
      %p131 = por %p129, %p130
      %p132 = scmp.ne.s32.totalorder %s121, %s122
      %p133 = scmp.eq.s32.totalorder %s19, 0
      %p134 = por %p132, %p133
      %p135 = scmp.ne.s32.totalorder %s121, %s122
      %p136 = scmp.eq.s32.totalorder %s20, 3
      %p137 = por %p135, %p136
      %p139 = scmp.ne.s32.totalorder %s122, %s138
      %p140 = scmp.eq.s32.totalorder %s20, 0
      %p141 = por %p139, %p140
      %p142 = scmp.le.s32.totalorder 1, %s14
      %p143 = scmp.lt.s32.totalorder %s14, 5
      %p144 = pnand %p142, %p143
      %p145 = pneg %p144
      // Predicated region
      $region9: #{tpu_custom_call.1} parent=5 // pred_check
        _
      $region10: #{tpu_custom_call.1} parent=5 // pred_check_branch
        %147 = sbr.rel (%p144) target = $region12
      $region11: #{tpu_custom_call.1} parent=5 // pred_region
        %s148 = ssub.s32 %s14, 1
        // Predicated region
        $region13: #{tpu_custom_call.1} parent=11 // pred_check
          %p149 = pneg %p61
        $region14: #{tpu_custom_call.1} parent=11 // pred_check_branch
          %151 = sbr.rel (%p149) target = $region16
        $region15: #{tpu_custom_call.1} parent=11 // pred_region
          _
        $region16: #{tpu_custom_call.1} parent=11 // pred_fallthru
          _
        // Predicated region
        $region17: #{tpu_custom_call.1} parent=11 // pred_check
          %p152 = pneg %p82
        $region18: #{tpu_custom_call.1} parent=11 // pred_check_branch
          %154 = sbr.rel (%p152) target = $region20
        $region19: #{tpu_custom_call.1} parent=11 // pred_region
          _
        $region20: #{tpu_custom_call.1} parent=11 // pred_fallthru
          _
      $region12: #{tpu_custom_call.1} parent=5 // pred_fallthru
        _
      %p155 = scmp.lt.s32.totalorder %s14, 4
      // Predicated region
      $region21: #{tpu_custom_call.1} parent=5 // pred_check
        %p156 = pneg %p155
      $region22: #{tpu_custom_call.1} parent=5 // pred_check_branch
        %158 = sbr.rel (%p156) target = $region24
      $region23: #{tpu_custom_call.1} parent=5 // pred_region
        // Predicated region
        $region25: #{tpu_custom_call.1} parent=23 // pred_check
          %p159 = pneg %p34
        $region26: #{tpu_custom_call.1} parent=23 // pred_check_branch
          %161 = sbr.rel (%p159) target = $region28
        $region27: #{tpu_custom_call.1} parent=23 // pred_region
          %s162 = smul.u32 2, %s14
          %p163 = scmp.lt.s32.totalorder %s162, 7
          %s164 = scalar_select %p163, %s162, 7
          %s165 = smul.addr %s164, 8
          %s166 = scalar_lea.vmem %s0, %s165
          %s167 = smul.u32 2, %s14
        $region28: #{tpu_custom_call.1} parent=23 // pred_fallthru
          _
      $region24: #{tpu_custom_call.1} parent=5 // pred_fallthru
        _
      %p168 = scmp.le.s32.totalorder 1, %s14
      %p169 = scmp.lt.s32.totalorder %s14, 5
      %p170 = pnand %p168, %p169
      %p171 = pneg %p170
      // Predicated region
      $region29: #{tpu_custom_call.1} parent=5 // pred_check
        _
      $region30: #{tpu_custom_call.1} parent=5 // pred_check_branch
        %173 = sbr.rel (%p170) target = $region32
      $region31: #{tpu_custom_call.1} parent=5 // pred_region
        %s174 = ssub.s32 %s14, 1
        %s175 = smul.u32 2, %s19
        %p176 = scmp.lt.s32.totalorder %s175, 7
        %s177 = scalar_select %p176, %s175, 7
        %s178 = smul.addr %s177, 8
        %s179 = scalar_lea.vmem %s0, %s178
        %p180 = pneg %p40
        %p181 = pneg %p37
        %p182 = pneg %p61
        %p183 = pneg %p58
        %p184 = pneg %p82
        %p185 = pneg %p79
        %p186 = pneg %p108
        %p187 = pneg %p105
        %s188 = sand.u32 %s95, 1
        %s189 = scalar_lea.sflag [#allocation3], %s188
        %s190 = sand.u32 %s95, 1
        %s191 = smul.addr %s190, 8
        %s192 = scalar_lea.vmem [#allocation2], %s191
        %p193 = pneg %p134
        %p194 = pneg %p131
        %s195 = smul.u32 2, %s19
        %p196 = scmp.lt.s32.totalorder %s195, 7
        %s197 = scalar_select %p196, %s195, 7
        %s198 = smul.addr %s197, 8
        %s199 = scalar_lea.vmem %s4, %s198
        %s200 = smul.u32 2, %s19
        %p201 = scmp.lt.s32.totalorder %s200, 7
        %s202 = scalar_select %p201, %s200, 7
        %s203 = smul.addr %s202, 8
        %s204 = scalar_lea.vmem %s0, %s203
        %s205 = smul.u32 2, %s19
        %s206 = smul.u32 2, %s19
        %s207 = smul.u32 2, %s19
        %p208 = scmp.lt.s32.totalorder %s207, 7
        %s209 = scalar_select %p208, %s207, 7
        %s210 = smul.addr %s209, 8
        %s211 = scalar_lea.vmem %s4, %s210
        %s212 = smul.u32 2, %s19
        %v214 = vld [vmem:[%s204] sm:$0xff]
        %v215 = vld [vmem:[%s204 + $0x8] sm:$0xff]
        %v216 = vpack.c.bf16 %v215, %v214
        %v217 = vld [vmem:[%s1] sm:$0xff]
        %v218 = vld [vmem:[%s1 + $0x8] sm:$0xff]
        %v221 = vunpack.c.l.b16 %v217
        %v222 = vunpack.c.h.b16 %v217
        %v223 = vunpack.c.l.b16 %v218
        %v224 = vunpack.c.h.b16 %v218
        %v225 = vpack.c.b16 %v223, %v221
        %v226 = vpack.c.b16 %v224, %v222
        %vm229 = vcmask 130048
        %v231 = vsel %vm229, %v216, 0
        %233 = vmatprep.subr.bf16.mxu0 0
        %234 = vmatpush1.bf16.msra.mxu0 0
        %235 = vmatprep.subr.bf16.mxu0 0
        %236 = vmatpush1.bf16.msra.mxu0 0
        %237 = vmatprep.subr.bf16.mxu0 0
        %238 = vmatpush1.bf16.msra.mxu0 0
        %239 = vmatprep.subr.bf16.mxu0 0
        %240 = vmatpush1.bf16.msra.mxu0 0
        %241 = vmatprep.subr.bf16.mxu0 0
        %242 = vmatpush1.bf16.msra.mxu0 0
        %243 = vmatprep.subr.bf16.mxu0 0
        %244 = vmatpush1.bf16.msra.mxu0 0
        %245 = vmatprep.subr.bf16.mxu0 0
        %246 = vmatpush1.bf16.msra.mxu0 0
        %247 = vmatprep.subr.bf16.mxu0 %v226
        %248 = vmatpush1.bf16.msra.mxu0 %v225
        %249 = vmatprep.subr.bf16.mxu0 0
        %250 = vmatpush2.bf16.msra.mxu0 0
        %251 = vmatprep.subr.bf16.mxu0 0
        %252 = vmatpush2.bf16.msra.mxu0 0
        %253 = vmatprep.subr.bf16.mxu0 0
        %254 = vmatpush2.bf16.msra.mxu0 0
        %255 = vmatprep.subr.bf16.mxu0 0
        %256 = vmatpush2.bf16.msra.mxu0 0
        %257 = vmatprep.subr.bf16.mxu0 0
        %258 = vmatpush2.bf16.msra.mxu0 0
        %259 = vmatprep.subr.bf16.mxu0 0
        %260 = vmatpush2.bf16.msra.mxu0 0
        %261 = vmatprep.subr.bf16.mxu0 0
        %262 = vmatpush2.bf16.msra.mxu0 0
        %263 = vmatprep.subr.bf16.mxu0 0
        %264 = vmatpush2.bf16.msra.mxu0 0
        %265 = vmatprep.mubr.bf16.mxu0 0
        %266 = vmatmul.mubr.bf16.gmra.mxu0 %v231
        %v267 = vpop.f32.mrf.mxu0
        %v268 = vadd.f32 0.0, %v267
        %v269 = vpop.f32.mrf.mxu0
        %v270 = vadd.f32 0.0, %v269
        %v271 = vpop.f32.mrf.mxu0
        %v272 = vadd.f32 0.0, %v271
        %v273 = vpop.f32.mrf.mxu0
        %v274 = vadd.f32 0.0, %v273
        %275 = vdwg.mxu0
        %v276 = vld [vmem:[%s2] sm:$0x1]
        %v278 = vlaneseq
        %v279 = vshrl.u32 %v278, 7
        %v280 = vsub.s32 0, %v279
        %v281 = vrot.slane %v276, %v280
        %v283 = vadd.f32 %v268, %v281
        %v284 = vadd.f32 %v272, %v281
        %v285 = vpack.c.bf16 %v284, %v283
        %v287 = vunpack.c.l.b16 %v285
        %v288 = vunpack.c.h.b16 %v285
        %v289 = vpack.c.b16 %v287, %v287
        %v290 = vpack.c.b16 %v288, %v288
        %293 = vst [vmem:[%s192] sm:$0xf] %v289
        %294 = vst [vmem:[%s192 + $0x4] sm:$0xf] %v290
        %295 = vst.msk [vmem:[%s211] sm:$0xff] %vm229, %v270
        %296 = vst.msk [vmem:[%s211 + $0x8] sm:$0xff] %vm229, %v274
        %s297 = sand.u32 %s95, 1
        %s298 = scalar_lea.sflag [#allocation3], %s297
        %s299 = sand.u32 %s95, 1
        %s300 = smul.addr %s299, 8
        %s301 = scalar_lea.vmem [#allocation2], %s300
        %s302 = smul.u32 2, %s19
        %p303 = scmp.lt.s32.totalorder %s302, 7
        %s304 = scalar_select %p303, %s302, 7
        %s305 = smul.addr %s304, 8
        %s306 = scalar_lea.vmem %s4, %s305
        // Predicated region
        $region33: #{tpu_custom_call.1} parent=31 // pred_check
          %p307 = pneg %p105
        $region34: #{tpu_custom_call.1} parent=31 // pred_check_branch
          %309 = sbr.rel (%p307) target = $region36
        $region35: #{tpu_custom_call.1} parent=31 // pred_region
          %s310 = smul.u32 2, %s19
          %s312 = ssub.s32 128, 128
          %313 = vsyncadd %s298, %s312
          %s314 = smul.addr %s310, 64
          %s315 = scalar_lea.hbm %s3, %s314
          %s316 = sshll.u32 %s301, 4
          %s317 = int_to_ptr.vmem [resolvable:$true] %s316
          %322 = dma.vmem_to_hbm [thread:$0]  %s317, 128, %s315, %s298, 64, 64, 4
        $region36: #{tpu_custom_call.1} parent=31 // pred_fallthru
          _
        // Predicated region
        $region37: #{tpu_custom_call.1} parent=31 // pred_check
          %p323 = pneg %p131
        $region38: #{tpu_custom_call.1} parent=31 // pred_check_branch
          %325 = sbr.rel (%p323) target = $region40
        $region39: #{tpu_custom_call.1} parent=31 // pred_region
          %s326 = smul.u32 2, %s19
        $region40: #{tpu_custom_call.1} parent=31 // pred_fallthru
          _
      $region32: #{tpu_custom_call.1} parent=5 // pred_fallthru
        _
      %p327 = scmp.le.s32.totalorder 2, %s14
      // Predicated region
      $region41: #{tpu_custom_call.1} parent=5 // pred_check
        %p328 = pneg %p327
      $region42: #{tpu_custom_call.1} parent=5 // pred_check_branch
        %330 = sbr.rel (%p328) target = $region44
      $region43: #{tpu_custom_call.1} parent=5 // pred_region
        %s331 = ssub.s32 %s14, 2
        // Predicated region
        $region45: #{tpu_custom_call.1} parent=43 // pred_check
          %p332 = pneg %p111
        $region46: #{tpu_custom_call.1} parent=43 // pred_check_branch
          %334 = sbr.rel (%p332) target = $region48
        $region47: #{tpu_custom_call.1} parent=43 // pred_region
          %s335 = sand.u32 %s96, 1
          %s336 = scalar_lea.sflag [#allocation3], %s335
          %s337 = sand.u32 %s96, 1
          %s338 = smul.addr %s337, 8
          %s339 = scalar_lea.vmem [#allocation2], %s338
          %340 = dma.done %s336, 128
        $region48: #{tpu_custom_call.1} parent=43 // pred_fallthru
          _
        // Predicated region
        $region49: #{tpu_custom_call.1} parent=43 // pred_check
          %p341 = pneg %p137
        $region50: #{tpu_custom_call.1} parent=43 // pred_check_branch
          %343 = sbr.rel (%p341) target = $region52
        $region51: #{tpu_custom_call.1} parent=43 // pred_region
          %s344 = smul.u32 2, %s20
          %p345 = scmp.lt.s32.totalorder %s344, 7
          %s346 = scalar_select %p345, %s344, 7
          %s347 = smul.addr %s346, 8
          %s348 = scalar_lea.vmem %s4, %s347
        $region52: #{tpu_custom_call.1} parent=43 // pred_fallthru
          _
      $region44: #{tpu_custom_call.1} parent=5 // pred_fallthru
        _
    $region6: #{tpu_custom_call.1} parent=1 // loop_footer
      %s18 = sadd.s32 1, %s14
    $region7: #{tpu_custom_call.1} parent=1 // loop_footer_branch
      %13 = sbr.rel target = $region3
    $region8: #{tpu_custom_call.1} parent=1 // loop_exit
      _
    %349 = vsyncpa [#allocation3], 1
    %s350 = scalar_lea.sflag [#allocation3], 1
    %351 = vsyncpa %s350, 1

</llo_original>
